<compile_context>
chip_gen: v7x
topology: tpu7x:2x2x1
jax: 0.10.0
libtpu: 0.0.40
codegen_flags: <defaults>
</compile_context>

<pallas_src>
import functools

import numpy as np

import jax
import jax.numpy as jnp
from jax.experimental import pallas as pl
from jax.experimental.pallas import tpu as pltpu


def _yolop_tile_kernel(mask_ref, pr_ref, gt_ref, out_ref, *, pos_weight, acc_rows):
    # mask_ref: (Rt, 128) int8  -- 1 inside the spatial crop, 0 outside (per-image mask).
    # pr_ref / gt_ref: (1, 2, Rt, 128) native dtype -- one row-tile of one image (NCHW view).
    # out_ref: (1, 4, acc_rows, 128) f32 resident accumulator for this parallel split:
    #   [0]=sum of per-element BCE, [1]=sum(pred==1), [2]=sum(tgt==1), [3]=sum(pred&tgt).
    b = pl.program_id(1)
    r = pl.program_id(2)

    @pl.when((b == 0) & (r == 0))
    def _init():
        out_ref[...] = jnp.zeros_like(out_ref)

    pr = pr_ref[0].astype(jnp.float32)           # (2, Rt, 128)
    gt = gt_ref[0].astype(jnp.float32)           # (2, Rt, 128)
    mask = mask_ref[...].astype(jnp.float32)     # (Rt, 128)

    # BCEWithLogits(pos_weight): stable softplus(-x) = max(-x,0) + log1p(exp(-|x|))  (EUP).
    sp = jnp.maximum(-pr, 0.0) + jnp.log1p(jnp.exp(-jnp.abs(pr)))
    loss_el = (1.0 - gt) * pr + (1.0 + (pos_weight - 1.0) * gt) * sp
    bce_tile = loss_el[0] + loss_el[1]           # (Rt, 128)

    # argmax over 2 channels: class 1 iff ch1 > ch0 (strict -> torch first-index tie-break).
    pred1 = (pr[1] > pr[0]).astype(jnp.float32)
    tgt1 = gt[1] * mask                          # binary labels assumed {0,1}
    inter = pred1 * tgt1                         # tgt1 already carries the crop mask

    rt = bce_tile.shape[0]
    grp = rt // acc_rows

    def tile_reduce(x):                          # (Rt,128) -> (acc_rows,128); VALU-only adds
        return x.reshape(grp, acc_rows, 128).sum(axis=0)

    out_ref[0, 0] += tile_reduce(bce_tile)
    out_ref[0, 1] += tile_reduce(pred1 * mask)
    out_ref[0, 2] += tile_reduce(tgt1)
    out_ref[0, 3] += tile_reduce(inter)


def _pick_row_tile(rows, max_rows=2048):
    """Largest row tile that divides `rows`, is a multiple of 8, and keeps blocks <= ~2 MiB."""
    if rows <= max_rows:
        return rows
    for rt in range(max_rows - (max_rows % 8), 7, -8):
        if rows % rt == 0:
            return rt
    return rows  # fallback: whole image per tile


def yolop_lane_loss(pr, gt, pads=(2, 2), pos_weight=0.2):
    """Row-tiled, batch-parallel Pallas kernel + tiny scalar epilogue in the wrapper."""
    pad_w, pad_h = int(pads[0]), int(pads[1])
    n, c, h, w = pr.shape
    assert c == 2, "kernel assumes 2-channel prediction/target"
    lanes = 128
    # TODO(synk): odd spatial sizes need a padded-rows path (mask can absorb the padding,
    # but the BCE denominator must then exclude padded elements).
    assert (h * w) % lanes == 0, "H*W must be a multiple of 128 for the lane-dense path"
    rows = (h * w) // lanes

    rt = _pick_row_tile(rows)
    tiles = rows // rt
    acc_rows = 8 if rt % 8 == 0 else rt

    # v7x has 2 TensorCores: split the batch 2-way on the leading "parallel" axis.
    n_splits = 2 if (n % 2 == 0 and n >= 2) else 1
    npb = n // n_splits

    # Zero-copy lane-dense views of the NCHW inputs (no transpose, no dtype upcast).
    pr4 = pr.reshape(n, c, rows, lanes)
    gt4 = gt.reshape(n, c, rows, lanes)

    # Per-image static crop mask as int8 (shared across batch via the index_map).
    m = np.zeros((h, w), dtype=np.int8)
    m[pad_h:h - pad_h, pad_w:w - pad_w] = 1
    mask = jnp.asarray(m.reshape(rows, lanes))

    kernel = functools.partial(
        _yolop_tile_kernel, pos_weight=float(pos_weight), acc_rows=acc_rows)

    parts = pl.pallas_call(
        kernel,
        out_shape=jax.ShapeDtypeStruct((n_splits, 4, acc_rows, lanes), jnp.float32),
        grid_spec=pltpu.PrefetchScalarGridSpec(
            num_scalar_prefetch=0,
            grid=(n_splits, npb, tiles),
            in_specs=[
                pl.BlockSpec((rt, lanes), lambda p, b, r: (r, 0)),
                pl.BlockSpec((1, c, rt, lanes), lambda p, b, r: (p * npb + b, 0, r, 0)),
                pl.BlockSpec((1, c, rt, lanes), lambda p, b, r: (p * npb + b, 0, r, 0)),
            ],
            out_specs=pl.BlockSpec((1, 4, acc_rows, lanes),
                                   lambda p, b, r: (p, 0, 0, 0)),
        ),
        compiler_params=pltpu.CompilerParams(
            dimension_semantics=("parallel", "arbitrary", "arbitrary")),
    )(mask, pr4, gt4)

    # Tiny scalar epilogue (cross-split combine + IoU algebra) in plain JAX.
    stats = jnp.sum(parts, axis=(0, 2, 3))                     # (4,) f32
    total = float(n * c * h * w)
    m_crop = float(n * (h - 2 * pad_h) * (w - 2 * pad_w))

    bce = stats[0] / total
    s_pred1, s_tgt1, inter1 = stats[1], stats[2], stats[3]
    # Class-0 stats derived algebraically (assumes binary gt[:, 1] labels).
    s_pred0 = m_crop - s_pred1
    s_tgt0 = m_crop - s_tgt1
    inter0 = m_crop - s_pred1 - s_tgt1 + inter1
    union0 = s_pred0 + s_tgt0 - inter0
    union1 = s_pred1 + s_tgt1 - inter1
    iou0 = jnp.where(union0 > 0.0, inter0 / jnp.maximum(union0, 1.0), 0.0)
    iou1 = jnp.where(union1 > 0.0, inter1 / jnp.maximum(union1, 1.0), 0.0)
    return bce + (1.0 - 0.5 * (iou0 + iou1))


def yolop_lane_loss_ref(pr, gt, pads=(2, 2), pos_weight=0.2):
    """Pure-JAX reference mirroring the PyTorch module (crop-slice / per-class formulation)."""
    pad_w, pad_h = int(pads[0]), int(pads[1])
    x = pr.reshape(-1).astype(jnp.float32)
    t = gt.reshape(-1).astype(jnp.float32)
    sp = jnp.maximum(-x, 0.0) + jnp.log1p(jnp.exp(-jnp.abs(x)))
    bce = jnp.mean((1.0 - t) * x + (1.0 + (pos_weight - 1.0) * t) * sp)

    n, c, h, w = gt.shape
    pr_c = pr[:, :, pad_h:h - pad_h, pad_w:w - pad_w]
    tgt = gt[:, 1, pad_h:h - pad_h, pad_w:w - pad_w].astype(jnp.int32)
    pred = jnp.argmax(pr_c, axis=1)
    ious = []
    for cls in (0, 1):
        p = (pred == cls).astype(jnp.float32)
        g = (tgt == cls).astype(jnp.float32)
        inter = jnp.sum(p * g)
        union = jnp.sum(p) + jnp.sum(g) - inter
        ious.append(jnp.where(union > 0.0, inter / jnp.maximum(union, 1.0), 0.0))
    liou = 1.0 - 0.5 * (ious[0] + ious[1])
    return bce + liou


if __name__ == "__main__":
    key = jax.random.PRNGKey(0)
    k1, k2 = jax.random.split(key)

    N, C, H, W = 2, 2, 16, 16
    pads = (2, 2)  # (pad_w, pad_h)

    pr = jax.random.normal(k1, (N, C, H, W), dtype=jnp.float32)
    gt = jax.random.bernoulli(k2, p=0.3, shape=(N, C, H, W)).astype(jnp.float32)

    loss = jax.block_until_ready(yolop_lane_loss(pr, gt, pads))
    loss_ref = jax.block_until_ready(yolop_lane_loss_ref(pr, gt, pads))

    assert jnp.allclose(loss, loss_ref, rtol=1e-5, atol=1e-5), (loss, loss_ref)
    print("KERNEL_OK")
</pallas_src>

<mosaic_0001>
module attributes {stable_mosaic.version = 11 : i64} {
  func.func @_yolop_tile_kernel(%arg0: i32, %arg1: i32, %arg2: i32, %arg3: memref<2x128xi8, #tpu.memory_space<vmem>>, %arg4: memref<1x2x2x128xf32, #tpu.memory_space<vmem>>, %arg5: memref<1x2x2x128xf32, #tpu.memory_space<vmem>>, %arg6: memref<1x4x2x128xf32, #tpu.memory_space<vmem>>) attributes {dimension_semantics = [#tpu.dimension_semantics<parallel>, #tpu.dimension_semantics<arbitrary>, #tpu.dimension_semantics<arbitrary>], iteration_bounds = array<i64: 2, 1, 1>, scalar_prefetch = 0 : i64, scratch_operands = 0 : i64, tpu.core_type = #tpu.core_type<tc>, window_params = [{transform_indices = @transform_0, window_bounds = array<i64: 2, 128>}, {transform_indices = @transform_1, window_bounds = array<i64: 1, 2, 2, 128>}, {transform_indices = @transform_2, window_bounds = array<i64: 1, 2, 2, 128>}, {transform_indices = @transform_3, window_bounds = array<i64: 1, 4, 2, 128>}]} {
    %c0_i32 = arith.constant 0 : i32
    %0 = arith.cmpi eq, %arg1, %c0_i32 : i32
    %c0_i32_0 = arith.constant 0 : i32
    %1 = arith.cmpi eq, %arg2, %c0_i32_0 : i32
    %2 = arith.andi %0, %1 : i1
    %3 = arith.extui %2 : i1 to i32
    %c0_i32_1 = arith.constant 0 : i32
    %4 = arith.cmpi ne, %3, %c0_i32_1 : i32
    scf.if %4 {
      %cst_49 = arith.constant 0.000000e+00 : f32
      %79 = vector.broadcast %cst_49 : f32 to vector<1x4x2x128xf32>
      %c0_50 = arith.constant 0 : index
      %c0_51 = arith.constant 0 : index
      %c0_52 = arith.constant 0 : index
      %c0_53 = arith.constant 0 : index
      %80 = vector.load %arg6[%c0_50, %c0_51, %c0_52, %c0_53] : memref<1x4x2x128xf32, #tpu.memory_space<vmem>>, vector<1x4x2x128xf32>
      tpu.vector_store %arg6[%c0_50, %c0_51, %c0_52, %c0_53], %79 {strides = array<i32>} : memref<1x4x2x128xf32, #tpu.memory_space<vmem>>, vector<1x4x2x128xf32>,
    } else {
    }
    %c0 = arith.constant 0 : index
    %c0_2 = arith.constant 0 : index
    %c0_3 = arith.constant 0 : index
    %c0_4 = arith.constant 0 : index
    %5 = vector.load %arg4[%c0, %c0_2, %c0_3, %c0_4] : memref<1x2x2x128xf32, #tpu.memory_space<vmem>>, vector<1x2x2x128xf32>
    %6 = vector.shape_cast %5 : vector<1x2x2x128xf32> to vector<2x2x128xf32>
    %c0_5 = arith.constant 0 : index
    %c0_6 = arith.constant 0 : index
    %c0_7 = arith.constant 0 : index
    %c0_8 = arith.constant 0 : index
    %7 = vector.load %arg5[%c0_5, %c0_6, %c0_7, %c0_8] : memref<1x2x2x128xf32, #tpu.memory_space<vmem>>, vector<1x2x2x128xf32>
    %8 = vector.shape_cast %7 : vector<1x2x2x128xf32> to vector<2x2x128xf32>
    %c0_9 = arith.constant 0 : index
    %c0_10 = arith.constant 0 : index
    %9 = vector.load %arg3[%c0_9, %c0_10] : memref<2x128xi8, #tpu.memory_space<vmem>>, vector<2x128xi8>
    %10 = arith.sitofp %9 : vector<2x128xi8> to vector<2x128xf32>
    %cst = arith.constant 0.000000e+00 : f32
    %11 = vector.broadcast %cst : f32 to vector<2x2x128xf32>
    %12 = arith.subf %11, %6 : vector<2x2x128xf32>
    %cst_11 = arith.constant 0.000000e+00 : f32
    %13 = vector.broadcast %cst_11 : f32 to vector<2x2x128xf32>
    %14 = arith.maximumf %12, %13 : vector<2x2x128xf32>
    %15 = math.absf %6 : vector<2x2x128xf32>
    %cst_12 = arith.constant 0.000000e+00 : f32
    %16 = vector.broadcast %cst_12 : f32 to vector<2x2x128xf32>
    %17 = arith.subf %16, %15 : vector<2x2x128xf32>
    %18 = math.exp %17 : vector<2x2x128xf32>
    %19 = math.log1p %18 : vector<2x2x128xf32>
    %20 = arith.addf %14, %19 : vector<2x2x128xf32>
    %cst_13 = arith.constant 1.000000e+00 : f32
    %21 = vector.broadcast %cst_13 : f32 to vector<2x2x128xf32>
    %22 = arith.subf %21, %8 : vector<2x2x128xf32>
    %23 = arith.mulf %22, %6 : vector<2x2x128xf32>
    %cst_14 = arith.constant -8.000000e-01 : f32
    %24 = vector.broadcast %cst_14 : f32 to vector<2x2x128xf32>
    %25 = arith.mulf %24, %8 : vector<2x2x128xf32>
    %cst_15 = arith.constant 1.000000e+00 : f32
    %26 = vector.broadcast %cst_15 : f32 to vector<2x2x128xf32>
    %27 = arith.addf %26, %25 : vector<2x2x128xf32>
    %28 = arith.mulf %27, %20 : vector<2x2x128xf32>
    %29 = arith.addf %23, %28 : vector<2x2x128xf32>
    %30 = vector.extract_strided_slice %29 {offsets = [0, 0, 0], sizes = [1, 2, 128], strides = [1, 1, 1]} : vector<2x2x128xf32> to vector<1x2x128xf32>
    %31 = vector.shape_cast %30 : vector<1x2x128xf32> to vector<2x128xf32>
    %32 = vector.extract_strided_slice %29 {offsets = [1, 0, 0], sizes = [1, 2, 128], strides = [1, 1, 1]} : vector<2x2x128xf32> to vector<1x2x128xf32>
    %33 = vector.shape_cast %32 : vector<1x2x128xf32> to vector<2x128xf32>
    %34 = arith.addf %31, %33 : vector<2x128xf32>
    %35 = vector.extract_strided_slice %6 {offsets = [1, 0, 0], sizes = [1, 2, 128], strides = [1, 1, 1]} : vector<2x2x128xf32> to vector<1x2x128xf32>
    %36 = vector.shape_cast %35 : vector<1x2x128xf32> to vector<2x128xf32>
    %37 = vector.extract_strided_slice %6 {offsets = [0, 0, 0], sizes = [1, 2, 128], strides = [1, 1, 1]} : vector<2x2x128xf32> to vector<1x2x128xf32>
    %38 = vector.shape_cast %37 : vector<1x2x128xf32> to vector<2x128xf32>
    %39 = arith.cmpf ogt, %36, %38 : vector<2x128xf32>
    %40 = arith.extui %39 : vector<2x128xi1> to vector<2x128xi32>
    %41 = arith.sitofp %40 : vector<2x128xi32> to vector<2x128xf32>
    %42 = vector.extract_strided_slice %8 {offsets = [1, 0, 0], sizes = [1, 2, 128], strides = [1, 1, 1]} : vector<2x2x128xf32> to vector<1x2x128xf32>
    %43 = vector.shape_cast %42 : vector<1x2x128xf32> to vector<2x128xf32>
    %44 = arith.mulf %43, %10 : vector<2x128xf32>
    %45 = arith.mulf %41, %44 : vector<2x128xf32>
    %c0_16 = arith.constant 0 : index
    %c0_17 = arith.constant 0 : index
    %c0_18 = arith.constant 0 : index
    %c0_19 = arith.constant 0 : index
    %46 = vector.load %arg6[%c0_16, %c0_17, %c0_18, %c0_19] : memref<1x4x2x128xf32, #tpu.memory_space<vmem>>, vector<1x1x2x128xf32>
    %47 = vector.shape_cast %46 : vector<1x1x2x128xf32> to vector<2x128xf32>
    %48 = vector.shape_cast %34 : vector<2x128xf32> to vector<1x2x128xf32>
    %cst_20 = arith.constant dense<0.000000e+00> : vector<2x128xf32>
    %49 = vector.multi_reduction <add>, %48, %cst_20 [0] : vector<1x2x128xf32> to vector<2x128xf32>
    %50 = arith.addf %47, %49 : vector<2x128xf32>
    %c0_21 = arith.constant 0 : index
    %c0_22 = arith.constant 0 : index
    %c0_23 = arith.constant 0 : index
    %c0_24 = arith.constant 0 : index
    %51 = vector.load %arg6[%c0_21, %c0_22, %c0_23, %c0_24] : memref<1x4x2x128xf32, #tpu.memory_space<vmem>>, vector<1x1x2x128xf32>
    %52 = vector.shape_cast %51 : vector<1x1x2x128xf32> to vector<2x128xf32>
    %53 = vector.shape_cast %50 : vector<2x128xf32> to vector<1x1x2x128xf32>
    tpu.vector_store %arg6[%c0_21, %c0_22, %c0_23, %c0_24], %53 {strides = array<i32>} : memref<1x4x2x128xf32, #tpu.memory_space<vmem>>, vector<1x1x2x128xf32>,
    %c0_25 = arith.constant 0 : index
    %c1 = arith.constant 1 : index
    %c0_26 = arith.constant 0 : index
    %c0_27 = arith.constant 0 : index
    %54 = vector.load %arg6[%c0_25, %c1, %c0_26, %c0_27] : memref<1x4x2x128xf32, #tpu.memory_space<vmem>>, vector<1x1x2x128xf32>
    %55 = vector.shape_cast %54 : vector<1x1x2x128xf32> to vector<2x128xf32>
    %56 = arith.mulf %41, %10 : vector<2x128xf32>
    %57 = vector.shape_cast %56 : vector<2x128xf32> to vector<1x2x128xf32>
    %cst_28 = arith.constant dense<0.000000e+00> : vector<2x128xf32>
    %58 = vector.multi_reduction <add>, %57, %cst_28 [0] : vector<1x2x128xf32> to vector<2x128xf32>
    %59 = arith.addf %55, %58 : vector<2x128xf32>
    %c0_29 = arith.constant 0 : index
    %c1_30 = arith.constant 1 : index
    %c0_31 = arith.constant 0 : index
    %c0_32 = arith.constant 0 : index
    %60 = vector.load %arg6[%c0_29, %c1_30, %c0_31, %c0_32] : memref<1x4x2x128xf32, #tpu.memory_space<vmem>>, vector<1x1x2x128xf32>
    %61 = vector.shape_cast %60 : vector<1x1x2x128xf32> to vector<2x128xf32>
    %62 = vector.shape_cast %59 : vector<2x128xf32> to vector<1x1x2x128xf32>
    tpu.vector_store %arg6[%c0_29, %c1_30, %c0_31, %c0_32], %62 {strides = array<i32>} : memref<1x4x2x128xf32, #tpu.memory_space<vmem>>, vector<1x1x2x128xf32>,
    %c0_33 = arith.constant 0 : index
    %c2 = arith.constant 2 : index
    %c0_34 = arith.constant 0 : index
    %c0_35 = arith.constant 0 : index
    %63 = vector.load %arg6[%c0_33, %c2, %c0_34, %c0_35] : memref<1x4x2x128xf32, #tpu.memory_space<vmem>>, vector<1x1x2x128xf32>
    %64 = vector.shape_cast %63 : vector<1x1x2x128xf32> to vector<2x128xf32>
    %65 = vector.shape_cast %44 : vector<2x128xf32> to vector<1x2x128xf32>
    %cst_36 = arith.constant dense<0.000000e+00> : vector<2x128xf32>
    %66 = vector.multi_reduction <add>, %65, %cst_36 [0] : vector<1x2x128xf32> to vector<2x128xf32>
    %67 = arith.addf %64, %66 : vector<2x128xf32>
    %c0_37 = arith.constant 0 : index
    %c2_38 = arith.constant 2 : index
    %c0_39 = arith.constant 0 : index
    %c0_40 = arith.constant 0 : index
    %68 = vector.load %arg6[%c0_37, %c2_38, %c0_39, %c0_40] : memref<1x4x2x128xf32, #tpu.memory_space<vmem>>, vector<1x1x2x128xf32>
    %69 = vector.shape_cast %68 : vector<1x1x2x128xf32> to vector<2x128xf32>
    %70 = vector.shape_cast %67 : vector<2x128xf32> to vector<1x1x2x128xf32>
    tpu.vector_store %arg6[%c0_37, %c2_38, %c0_39, %c0_40], %70 {strides = array<i32>} : memref<1x4x2x128xf32, #tpu.memory_space<vmem>>, vector<1x1x2x128xf32>,
    %c0_41 = arith.constant 0 : index
    %c3 = arith.constant 3 : index
    %c0_42 = arith.constant 0 : index
    %c0_43 = arith.constant 0 : index
    %71 = vector.load %arg6[%c0_41, %c3, %c0_42, %c0_43] : memref<1x4x2x128xf32, #tpu.memory_space<vmem>>, vector<1x1x2x128xf32>
    %72 = vector.shape_cast %71 : vector<1x1x2x128xf32> to vector<2x128xf32>
    %73 = vector.shape_cast %45 : vector<2x128xf32> to vector<1x2x128xf32>
    %cst_44 = arith.constant dense<0.000000e+00> : vector<2x128xf32>
    %74 = vector.multi_reduction <add>, %73, %cst_44 [0] : vector<1x2x128xf32> to vector<2x128xf32>
    %75 = arith.addf %72, %74 : vector<2x128xf32>
    %c0_45 = arith.constant 0 : index
    %c3_46 = arith.constant 3 : index
    %c0_47 = arith.constant 0 : index
    %c0_48 = arith.constant 0 : index
    %76 = vector.load %arg6[%c0_45, %c3_46, %c0_47, %c0_48] : memref<1x4x2x128xf32, #tpu.memory_space<vmem>>, vector<1x1x2x128xf32>
    %77 = vector.shape_cast %76 : vector<1x1x2x128xf32> to vector<2x128xf32>
    %78 = vector.shape_cast %75 : vector<2x128xf32> to vector<1x1x2x128xf32>
    tpu.vector_store %arg6[%c0_45, %c3_46, %c0_47, %c0_48], %78 {strides = array<i32>} : memref<1x4x2x128xf32, #tpu.memory_space<vmem>>, vector<1x1x2x128xf32>,
    return
  }
  func.func @transform_0(%arg0: i32, %arg1: i32, %arg2: i32) -> (i32, i32) {
    %c0_i32 = arith.constant 0 : i32
    %c0_i32_0 = arith.constant 0 : i32
    return %arg2, %c0_i32 : i32, i32
  }
  func.func @transform_1(%arg0: i32, %arg1: i32, %arg2: i32) -> (i32, i32, i32, i32) {
    %c1_i32 = arith.constant 1 : i32
    %0 = arith.muli %arg0, %c1_i32 : i32
    %1 = arith.addi %0, %arg1 : i32
    %c0_i32 = arith.constant 0 : i32
    %c0_i32_0 = arith.constant 0 : i32
    %c0_i32_1 = arith.constant 0 : i32
    return %1, %c0_i32, %arg2, %c0_i32_0 : i32, i32, i32, i32
  }
  func.func @transform_2(%arg0: i32, %arg1: i32, %arg2: i32) -> (i32, i32, i32, i32) {
    %c1_i32 = arith.constant 1 : i32
    %0 = arith.muli %arg0, %c1_i32 : i32
    %1 = arith.addi %0, %arg1 : i32
    %c0_i32 = arith.constant 0 : i32
    %c0_i32_0 = arith.constant 0 : i32
    %c0_i32_1 = arith.constant 0 : i32
    return %1, %c0_i32, %arg2, %c0_i32_0 : i32, i32, i32, i32
  }
  func.func @transform_3(%arg0: i32, %arg1: i32, %arg2: i32) -> (i32, i32, i32, i32) {
    %c0_i32 = arith.constant 0 : i32
    %c0_i32_0 = arith.constant 0 : i32
    %c0_i32_1 = arith.constant 0 : i32
    %c0_i32_2 = arith.constant 0 : i32
    return %arg0, %c0_i32, %c0_i32_0, %c0_i32_1 : i32, i32, i32, i32
  }
}

</mosaic_0001>

<llo_original>
// kernel: tpu_custom_call.1
$region0: #{tpu_custom_call.1}
  #allocation0 [shape = 'u32[]', space=smem, size = 0x4, offset = 0x4, fixed_abs, tag = 'smem constant byte address 0x4 - core index']
  #allocation1 [shape = 'u32[144,128]{1,0:T(1,128)}', space=vmem, size = 0x12000, scoped, tag = 'internal scratch']
  %s0 = inlined_call_operand.hbm [shape: s8[2,128], index: 0, kind: input, shape index: {}]
  %s1 = inlined_call_operand.hbm [shape: f32[2,2,2,128], index: 1, kind: input, shape index: {}]
  %s2 = inlined_call_operand.hbm [shape: f32[2,2,2,128], index: 2, kind: input, shape index: {}]
  %s3 = inlined_call_operand.hbm [shape: f32[2,4,2,128], index: 3, kind: output, shape index: {}]
  %s4 = sld [smem:[#allocation0]]
  $region61: #{tpu_custom_call.1} parent=0
    _
  %s6 = ssub.s32 1, %s4
  %s7 = scalar_select 0, %s6, %s4
  $region1: #{tpu_custom_call.1} parent=0
    #allocation2 [shape = 'u8[512]{0}', space=vmem, size = 0x400, scoped, tag = 'input window, operand 0, single buffered']
    #allocation3 [shape = 's32[2]{0}', space=sflag, size = 0x8, scoped, tag = 'scoped memory for tpu_custom_call.1']
    #allocation4 [shape = 's32[2]{0}', space=sflag, size = 0x8, scoped, tag = 'scoped memory for tpu_custom_call.1']
    #allocation5 [shape = 'u8[4096]{0}', space=vmem, size = 0x1000, scoped, tag = 'input window, operand 1']
    #allocation6 [shape = 's32[2]{0}', space=sflag, size = 0x8, scoped, tag = 'scoped memory for tpu_custom_call.1']
    #allocation7 [shape = 'u8[4096]{0}', space=vmem, size = 0x1000, scoped, tag = 'input window, operand 2']
    #allocation8 [shape = 'u8[8192]{0}', space=vmem, size = 0x2000, scoped, tag = 'output window, operand 0']
    %8 = vsyncpa [#allocation3], 0
    %9 = vsyncpa [#allocation6], 0
    %s10 = scalar_lea.sflag [#allocation6], 1
    %11 = vsyncpa %s10, 0
    %12 = vsyncpa [#allocation4], 0
    %s13 = scalar_lea.sflag [#allocation4], 1
    %14 = vsyncpa %s13, 0
    loop: start=0, step=1, limit=4
    $region2: #{tpu_custom_call.1} parent=1 // loop_pre_header
      _
    $region3: #{tpu_custom_call.1} parent=1 // loop_header
      %s16 = sphi 0, %s20
      %p17 = scmp.ge.s32.totalorder %s16, 4
      %s23 = sphi 0, %s42
      %s24 = sphi 0, %s38
      %s25 = sphi 0, %s34
      %s26 = sphi 0, %s23
      %s27 = sphi 0, %s24
      %s28 = sphi 0, %s25
      %s29 = sphi 0, %s26
      %s30 = sphi 0, %s27
      %s31 = sphi 0, %s28
      %s45 = sphi 0, %s47
      %s48 = sphi 0, %s45
      %s49 = sphi 0, %s48
      %s65 = sphi 0, %s49
      %s75 = sphi 0, %s77
      %s78 = sphi 0, %s75
      %s79 = sphi 0, %s78
      %s95 = sphi 0, %s79
      %s105 = sphi 0, %s107
      %s108 = sphi 0, %s105
      %s109 = sphi 0, %s108
      %s125 = sphi 0, %s109
      %s131 = sphi 0, %s133
      %s134 = sphi 0, %s131
      %s135 = sphi 0, %s134
      %s151 = sphi 0, %s135
    $region4: #{tpu_custom_call.1} parent=1 // loop_header_branch
      %19 = sbr.rel (%p17) target = $region8
    $region5: #{tpu_custom_call.1} parent=1 // loop_body
      %s21 = ssub.s32 %s16, 1
      %s22 = ssub.s32 %s16, 2
      %s32 = sadd.s32 1, %s25
      %p33 = scmp.ge.s32.totalorder %s32, 1
      %s34 = scalar_select %p33, 0, %s32
      %s35 = sadd.s32 1, %s24
      %s36 = scalar_select %p33, %s35, %s24
      %p37 = scmp.ge.s32.totalorder %s36, 1
      %s38 = scalar_select %p37, 0, %s36
      %s39 = sadd.s32 1, %s23
      %s40 = scalar_select %p37, %s39, %s23
      %p41 = scmp.ge.s32.totalorder %s40, 2
      %s42 = scalar_select %p41, 0, %s40
      %s43 = ssub.s32 %s25, %s34
      %p44 = scmp.eq.s32.totalorder %s43, 0
      %s46 = sadd.s32 %s45, 1
      %s47 = scalar_select %p44, %s45, %s46
      %p50 = pneg %p44
      %p51 = scmp.eq.s32.totalorder %s16, 1
      %p52 = por %p50, %p51
      %p53 = scmp.ne.s32.totalorder %s45, %s48
      %p54 = scmp.eq.s32.totalorder %s16, 0
      %p55 = por %p53, %p54
      %p56 = scmp.ne.s32.totalorder %s45, %s48
      %p57 = scmp.eq.s32.totalorder %s21, 1
      %p58 = por %p56, %p57
      %p59 = scmp.ne.s32.totalorder %s48, %s49
      %p60 = scmp.eq.s32.totalorder %s21, 0
      %p61 = por %p59, %p60
      %p62 = scmp.ne.s32.totalorder %s48, %s49
      %p63 = scmp.eq.s32.totalorder %s22, 1
      %p64 = por %p62, %p63
      %p66 = scmp.ne.s32.totalorder %s49, %s65
      %p67 = scmp.eq.s32.totalorder %s22, 0
      %p68 = por %p66, %p67
      %s69 = sadd.s32 %s23, %s24
      %s70 = sadd.s32 %s42, %s38
      %s71 = ssub.s32 %s69, %s70
      %s72 = ssub.s32 %s25, %s34
      %s73 = sor.u32 %s71, %s72
      %p74 = scmp.eq.s32.totalorder %s73, 0
      %s76 = sadd.s32 %s75, 1
      %s77 = scalar_select %p74, %s75, %s76
      %p80 = pneg %p74
      %p81 = scmp.eq.s32.totalorder %s16, 1
      %p82 = por %p80, %p81
      %p83 = scmp.ne.s32.totalorder %s75, %s78
      %p84 = scmp.eq.s32.totalorder %s16, 0
      %p85 = por %p83, %p84
      %p86 = scmp.ne.s32.totalorder %s75, %s78
      %p87 = scmp.eq.s32.totalorder %s21, 1
      %p88 = por %p86, %p87
      %p89 = scmp.ne.s32.totalorder %s78, %s79
      %p90 = scmp.eq.s32.totalorder %s21, 0
      %p91 = por %p89, %p90
      %p92 = scmp.ne.s32.totalorder %s78, %s79
      %p93 = scmp.eq.s32.totalorder %s22, 1
      %p94 = por %p92, %p93
      %p96 = scmp.ne.s32.totalorder %s79, %s95
      %p97 = scmp.eq.s32.totalorder %s22, 0
      %p98 = por %p96, %p97
      %s99 = sadd.s32 %s23, %s24
      %s100 = sadd.s32 %s42, %s38
      %s101 = ssub.s32 %s99, %s100
      %s102 = ssub.s32 %s25, %s34
      %s103 = sor.u32 %s101, %s102
      %p104 = scmp.eq.s32.totalorder %s103, 0
      %s106 = sadd.s32 %s105, 1
      %s107 = scalar_select %p104, %s105, %s106
      %p110 = pneg %p104
      %p111 = scmp.eq.s32.totalorder %s16, 1
      %p112 = por %p110, %p111
      %p113 = scmp.ne.s32.totalorder %s105, %s108
      %p114 = scmp.eq.s32.totalorder %s16, 0
      %p115 = por %p113, %p114
      %p116 = scmp.ne.s32.totalorder %s105, %s108
      %p117 = scmp.eq.s32.totalorder %s21, 1
      %p118 = por %p116, %p117
      %p119 = scmp.ne.s32.totalorder %s108, %s109
      %p120 = scmp.eq.s32.totalorder %s21, 0
      %p121 = por %p119, %p120
      %p122 = scmp.ne.s32.totalorder %s108, %s109
      %p123 = scmp.eq.s32.totalorder %s22, 1
      %p124 = por %p122, %p123
      %p126 = scmp.ne.s32.totalorder %s109, %s125
      %p127 = scmp.eq.s32.totalorder %s22, 0
      %p128 = por %p126, %p127
      %s129 = ssub.s32 %s23, %s42
      %p130 = scmp.eq.s32.totalorder %s129, 0
      %s132 = sadd.s32 %s131, 1
      %s133 = scalar_select %p130, %s131, %s132
      %p136 = pneg %p130
      %p137 = scmp.eq.s32.totalorder %s16, 1
      %p138 = por %p136, %p137
      %p139 = scmp.ne.s32.totalorder %s131, %s134
      %p140 = scmp.eq.s32.totalorder %s16, 0
      %p141 = por %p139, %p140
      %p142 = scmp.ne.s32.totalorder %s131, %s134
      %p143 = scmp.eq.s32.totalorder %s21, 1
      %p144 = por %p142, %p143
      %p145 = scmp.ne.s32.totalorder %s134, %s135
      %p146 = scmp.eq.s32.totalorder %s21, 0
      %p147 = por %p145, %p146
      %p148 = scmp.ne.s32.totalorder %s134, %s135
      %p149 = scmp.eq.s32.totalorder %s22, 1
      %p150 = por %p148, %p149
      %p152 = scmp.ne.s32.totalorder %s135, %s151
      %p153 = scmp.eq.s32.totalorder %s22, 0
      %p154 = por %p152, %p153
      %p155 = scmp.le.s32.totalorder 1, %s16
      %p156 = scmp.lt.s32.totalorder %s16, 3
      %p157 = pnand %p155, %p156
      %p158 = pneg %p157
      // Predicated region
      $region9: #{tpu_custom_call.1} parent=5 // pred_check
        _
      $region10: #{tpu_custom_call.1} parent=5 // pred_check_branch
        %160 = sbr.rel (%p157) target = $region12
      $region11: #{tpu_custom_call.1} parent=5 // pred_region
        %s161 = ssub.s32 %s16, 1
        // Predicated region
        $region13: #{tpu_custom_call.1} parent=11 // pred_check
          %p162 = pneg %p61
        $region14: #{tpu_custom_call.1} parent=11 // pred_check_branch
          %164 = sbr.rel (%p162) target = $region16
        $region15: #{tpu_custom_call.1} parent=11 // pred_region
          %s166 = ssub.s32 16, 16
          %167 = vsyncadd [#allocation3], %s166
          %s168 = smul.addr %s28, 16
          %s169 = scalar_lea.hbm %s0, %s168
          %s171 = sshll.u32 [#allocation2], 4
          %s172 = int_to_ptr.vmem [resolvable:$true] %s171
          %174 = dma.hbm_to_vmem [thread:$0]  %s169, 16, %s172, [#allocation3]
        $region16: #{tpu_custom_call.1} parent=11 // pred_fallthru
          _
      $region12: #{tpu_custom_call.1} parent=5 // pred_fallthru
        _
      %p175 = scmp.lt.s32.totalorder %s16, 2
      // Predicated region
      $region17: #{tpu_custom_call.1} parent=5 // pred_check
        %p176 = pneg %p175
      $region18: #{tpu_custom_call.1} parent=5 // pred_check_branch
        %178 = sbr.rel (%p176) target = $region20
      $region19: #{tpu_custom_call.1} parent=5 // pred_region
        // Predicated region
        $region21: #{tpu_custom_call.1} parent=19 // pred_check
          %p179 = pneg %p85
        $region22: #{tpu_custom_call.1} parent=19 // pred_check_branch
          %181 = sbr.rel (%p179) target = $region24
        $region23: #{tpu_custom_call.1} parent=19 // pred_region
          %s182 = sand.u32 %s16, 1
          %s183 = scalar_lea.sflag [#allocation6], %s182
          %s184 = sand.u32 %s75, 1
          %s185 = smul.addr %s184, 4
          %s186 = scalar_lea.vmem [#allocation5], %s185
          %s187 = sadd.s32 %s23, %s24
          %s189 = ssub.s32 64, 64
          %190 = vsyncadd %s183, %s189
          %s191 = smul.addr %s187, 2
          %s192 = sadd.s32 %s25, %s191
          %s193 = smul.addr %s192, 32
          %s194 = scalar_lea.hbm %s1, %s193
          %s195 = sshll.u32 %s186, 4
          %s196 = int_to_ptr.vmem [resolvable:$true] %s195
          %201 = dma.hbm_to_vmem [thread:$0]  %s194, 64, %s196, %s183, 32, 32, 2
        $region24: #{tpu_custom_call.1} parent=19 // pred_fallthru
          _
        // Predicated region
        $region25: #{tpu_custom_call.1} parent=19 // pred_check
          %p202 = pneg %p115
        $region26: #{tpu_custom_call.1} parent=19 // pred_check_branch
          %204 = sbr.rel (%p202) target = $region28
        $region27: #{tpu_custom_call.1} parent=19 // pred_region
          %s205 = sand.u32 %s16, 1
          %s206 = scalar_lea.sflag [#allocation6], %s205
          %s207 = sand.u32 %s105, 1
          %s208 = smul.addr %s207, 4
          %s209 = scalar_lea.vmem [#allocation7], %s208
          %s210 = sadd.s32 %s23, %s24
          %s212 = ssub.s32 64, 64
          %213 = vsyncadd %s206, %s212
          %s214 = smul.addr %s210, 2
          %s215 = sadd.s32 %s25, %s214
          %s216 = smul.addr %s215, 32
          %s217 = scalar_lea.hbm %s2, %s216
          %s218 = sshll.u32 %s209, 4
          %s219 = int_to_ptr.vmem [resolvable:$true] %s218
          %224 = dma.hbm_to_vmem [thread:$0]  %s217, 64, %s219, %s206, 32, 32, 2
        $region28: #{tpu_custom_call.1} parent=19 // pred_fallthru
          _
      $region20: #{tpu_custom_call.1} parent=5 // pred_fallthru
        _
      %p225 = scmp.le.s32.totalorder 1, %s16
      %p226 = scmp.lt.s32.totalorder %s16, 3
      %p227 = pnand %p225, %p226
      %p228 = pneg %p227
      // Predicated region
      $region29: #{tpu_custom_call.1} parent=5 // pred_check
        _
      $region30: #{tpu_custom_call.1} parent=5 // pred_check_branch
        %230 = sbr.rel (%p227) target = $region32
      $region31: #{tpu_custom_call.1} parent=5 // pred_region
        %s231 = ssub.s32 %s16, 1
        // Predicated region
        $region33: #{tpu_custom_call.1} parent=31 // pred_check
          %p232 = pneg %p61
        $region34: #{tpu_custom_call.1} parent=31 // pred_check_branch
          %234 = sbr.rel (%p232) target = $region36
        $region35: #{tpu_custom_call.1} parent=31 // pred_region
          %235 = dma.done [#allocation3], 16
        $region36: #{tpu_custom_call.1} parent=31 // pred_fallthru
          _
        %s236 = sand.u32 %s21, 1
        %s237 = scalar_lea.sflag [#allocation6], %s236
        %s238 = sand.u32 %s78, 1
        %s239 = smul.addr %s238, 4
        %s240 = scalar_lea.vmem [#allocation5], %s239
        // Predicated region
        $region37: #{tpu_custom_call.1} parent=31 // pred_check
          %p241 = pneg %p91
        $region38: #{tpu_custom_call.1} parent=31 // pred_check_branch
          %243 = sbr.rel (%p241) target = $region40
        $region39: #{tpu_custom_call.1} parent=31 // pred_region
          %244 = dma.done %s237, 64
        $region40: #{tpu_custom_call.1} parent=31 // pred_fallthru
          _
        %s245 = sand.u32 %s21, 1
        %s246 = scalar_lea.sflag [#allocation6], %s245
        %s247 = sand.u32 %s108, 1
        %s248 = smul.addr %s247, 4
        %s249 = scalar_lea.vmem [#allocation7], %s248
        // Predicated region
        $region41: #{tpu_custom_call.1} parent=31 // pred_check
          %p250 = pneg %p121
        $region42: #{tpu_custom_call.1} parent=31 // pred_check_branch
          %252 = sbr.rel (%p250) target = $region44
        $region43: #{tpu_custom_call.1} parent=31 // pred_region
          %253 = dma.done %s246, 64
        $region44: #{tpu_custom_call.1} parent=31 // pred_fallthru
          _
        %p254 = pneg %p61
        %p255 = pneg %p58
        %s256 = sand.u32 %s21, 1
        %s257 = scalar_lea.sflag [#allocation6], %s256
        %s258 = sand.u32 %s78, 1
        %s259 = smul.addr %s258, 4
        %s260 = scalar_lea.vmem [#allocation5], %s259
        %p261 = pneg %p91
        %p262 = pneg %p88
        %s263 = sand.u32 %s21, 1
        %s264 = scalar_lea.sflag [#allocation6], %s263
        %s265 = sand.u32 %s108, 1
        %s266 = smul.addr %s265, 4
        %s267 = scalar_lea.vmem [#allocation7], %s266
        %p268 = pneg %p121
        %p269 = pneg %p118
        %p270 = pneg %p147
        %p271 = pneg %p144
        %s272 = sand.u32 %s134, 1
        %s273 = scalar_lea.sflag [#allocation4], %s272
        %s274 = sand.u32 %s134, 1
        %s275 = smul.addr %s274, 8
        %s276 = scalar_lea.vmem [#allocation8], %s275
        %s277 = sadd.s32 %s26, %s27
        %s278 = sadd.s32 %s26, %s27
        %p279 = scmp.eq.s32.totalorder %s27, 0
        %p280 = scmp.eq.s32.totalorder %s28, 0
        %p281 = pnand %p279, %p280
        %p282 = pneg %p281
        // Predicated region
        $region45: #{tpu_custom_call.1} parent=31 // pred_check
          _
        $region46: #{tpu_custom_call.1} parent=31 // pred_check_branch
          %284 = sbr.rel (%p281) target = $region48
        $region47: #{tpu_custom_call.1} parent=31 // pred_region
          %285 = vst [vmem:[%s276] sm:$0x3] 0.0
          %286 = vst [vmem:[%s276 + $0x2] sm:$0x3] 0.0
          %287 = vst [vmem:[%s276 + $0x4] sm:$0x3] 0.0
          %288 = vst [vmem:[%s276 + $0x6] sm:$0x3] 0.0
        $region48: #{tpu_custom_call.1} parent=31 // pred_fallthru
          _
        %v289 = vld [vmem:[%s240] sm:$0x3]
        %v290 = vld [vmem:[%s240 + $0x2] sm:$0x3]
        %v291 = vld [vmem:[%s249] sm:$0x3]
        %v292 = vld [vmem:[%s249 + $0x2] sm:$0x3]
        %v293 = vld [vmem:[#allocation2] sm:$0x1]
        %v294 = vunpack.c.0.s8 %v293
        %v295 = vcvt.s32.f32 %v294
        %v296 = vsub.f32 0.0, %v289
        %v297 = vsub.f32 0.0, %v290
        %v298 = vmax.f32 %v296, 0.0
        %v299 = vmax.f32 %v297, 0.0
        %v300 = vand.u32 2147483647, %v289
        %v301 = vand.u32 2147483647, %v290
        %v302 = vsub.f32 0.0, %v300
        %v303 = vsub.f32 0.0, %v301
        %v304 = vmul.f32 %v302, 1.442695
        %v305 = vpow.pop %v304
        %v306 = vmul.f32 %v303, 1.442695
        %v307 = vpow.pop %v306
        %v308 = vadd.f32 %v305, 1.0
        %v309 = vlog2.pop %v308
        %v310 = vmul.f32 %v309, 0.6931472
        %v311 = vmul.f32 -0.5, %v305
        %v312 = vadd.f32 %v311, 1.0
        %v313 = vmul.f32 %v312, %v305
        %v314 = vand.u32 2147483647, %v305
        %vm315 = vcmp.lt.f32.partialorder %v314, 0.0004427343
        %v316 = vsel %vm315, %v313, %v310
        %v317 = vadd.f32 %v307, 1.0
        %v318 = vlog2.pop %v317
        %v319 = vmul.f32 %v318, 0.6931472
        %v320 = vmul.f32 -0.5, %v307
        %v321 = vadd.f32 %v320, 1.0
        %v322 = vmul.f32 %v321, %v307
        %v323 = vand.u32 2147483647, %v307
        %vm324 = vcmp.lt.f32.partialorder %v323, 0.0004427343
        %v325 = vsel %vm324, %v322, %v319
        %v326 = vadd.f32 %v298, %v316
        %v327 = vadd.f32 %v299, %v325
        %v328 = vsub.f32 1.0, %v291
        %v329 = vsub.f32 1.0, %v292
        %v330 = vmul.f32 %v328, %v289
        %v331 = vmul.f32 %v329, %v290
        %v332 = vmul.f32 %v291, -0.8
        %v333 = vmul.f32 %v292, -0.8
        %v334 = vadd.f32 %v332, 1.0
        %v335 = vadd.f32 %v333, 1.0
        %v336 = vmul.f32 %v334, %v326
        %v337 = vmul.f32 %v335, %v327
        %v338 = vadd.f32 %v330, %v336
        %v339 = vadd.f32 %v331, %v337
        %v340 = vadd.f32 %v338, %v339
        %vm341 = vcmp.gt.f32.partialorder %v290, %v289
        %v342 = vsel %vm341, 1, 0
        %v343 = vcvt.s32.f32 %v342
        %v344 = vmul.f32 %v292, %v295
        %v345 = vmul.f32 %v343, %v344
        %v346 = vld [vmem:[%s276] sm:$0x3]
        %v347 = vadd.f32 %v340, 0.0
        %v348 = vadd.f32 %v346, %v347
        %349 = vst [vmem:[%s276] sm:$0x3] %v348
        %s350 = scalar_lea.vmem %s276, 2 [#allocation8]
        %v351 = vld [vmem:[%s350] sm:$0x3]
        %v352 = vmul.f32 %v343, %v295
        %v353 = vadd.f32 %v352, 0.0
        %v354 = vadd.f32 %v351, %v353
        %355 = vst [vmem:[%s350] sm:$0x3] %v354
        %s356 = scalar_lea.vmem %s276, 4 [#allocation8]
        %v357 = vld [vmem:[%s356] sm:$0x3]
        %v358 = vadd.f32 %v344, 0.0
        %v359 = vadd.f32 %v357, %v358
        %360 = vst [vmem:[%s356] sm:$0x3] %v359
        %s361 = scalar_lea.vmem %s276, 6 [#allocation8]
        %v362 = vld [vmem:[%s361] sm:$0x3]
        %v363 = vadd.f32 %v345, 0.0
        %v364 = vadd.f32 %v362, %v363
        %365 = vst [vmem:[%s361] sm:$0x3] %v364
        %s366 = sand.u32 %s134, 1
        %s367 = scalar_lea.sflag [#allocation4], %s366
        %s368 = sand.u32 %s134, 1
        %s369 = smul.addr %s368, 8
        %s370 = scalar_lea.vmem [#allocation8], %s369
        // Predicated region
        $region49: #{tpu_custom_call.1} parent=31 // pred_check
          %p371 = pneg %p144
        $region50: #{tpu_custom_call.1} parent=31 // pred_check_branch
          %373 = sbr.rel (%p371) target = $region52
        $region51: #{tpu_custom_call.1} parent=31 // pred_region
          %s375 = ssub.s32 128, 128
          %376 = vsyncadd %s367, %s375
          %s377 = smul.addr %s26, 4
          %s378 = smul.addr %s377, 32
          %s379 = scalar_lea.hbm %s3, %s378
          %s380 = sshll.u32 %s370, 4
          %s381 = int_to_ptr.vmem [resolvable:$true] %s380
          %386 = dma.vmem_to_hbm [thread:$0]  %s381, 128, %s379, %s367, 32, 32, 2
        $region52: #{tpu_custom_call.1} parent=31 // pred_fallthru
          _
      $region32: #{tpu_custom_call.1} parent=5 // pred_fallthru
        _
      %p387 = scmp.le.s32.totalorder 2, %s16
      // Predicated region
      $region53: #{tpu_custom_call.1} parent=5 // pred_check
        %p388 = pneg %p387
      $region54: #{tpu_custom_call.1} parent=5 // pred_check_branch
        %390 = sbr.rel (%p388) target = $region56
      $region55: #{tpu_custom_call.1} parent=5 // pred_region
        %s391 = ssub.s32 %s16, 2
        // Predicated region
        $region57: #{tpu_custom_call.1} parent=55 // pred_check
          %p392 = pneg %p150
        $region58: #{tpu_custom_call.1} parent=55 // pred_check_branch
          %394 = sbr.rel (%p392) target = $region60
        $region59: #{tpu_custom_call.1} parent=55 // pred_region
          %s395 = sand.u32 %s135, 1
          %s396 = scalar_lea.sflag [#allocation4], %s395
          %s397 = sand.u32 %s135, 1
          %s398 = smul.addr %s397, 8
          %s399 = scalar_lea.vmem [#allocation8], %s398
          %400 = dma.done %s396, 128
        $region60: #{tpu_custom_call.1} parent=55 // pred_fallthru
          _
      $region56: #{tpu_custom_call.1} parent=5 // pred_fallthru
        _
    $region6: #{tpu_custom_call.1} parent=1 // loop_footer
      %s20 = sadd.s32 1, %s16
    $region7: #{tpu_custom_call.1} parent=1 // loop_footer_branch
      %15 = sbr.rel target = $region3
    $region8: #{tpu_custom_call.1} parent=1 // loop_exit
      _
    %401 = vsyncpa [#allocation3], 1
    %s402 = scalar_lea.sflag [#allocation3], 1
    %403 = vsyncpa %s402, 1
    %404 = vsyncpa [#allocation6], 1
    %s405 = scalar_lea.sflag [#allocation6], 1
    %406 = vsyncpa %s405, 1
    %407 = vsyncpa [#allocation4], 1
    %s408 = scalar_lea.sflag [#allocation4], 1
    %409 = vsyncpa %s408, 1

</llo_original>
